<compile_context>
chip_gen: v7x
topology: tpu7x:2x2x1
jax: 0.10.0
libtpu: 0.0.40
codegen_flags: <defaults>
</compile_context>

<pallas_src>
import functools

import jax
import jax.numpy as jnp
from jax.experimental import pallas as pl
from jax.experimental.pallas import tpu as pltpu


def _round_up(a: int, b: int) -> int:
    return pl.cdiv(a, b) * b


def _pad_to(a, axis, target):
    pad = target - a.shape[axis]
    if pad == 0:
        return a
    widths = [(0, 0)] * a.ndim
    widths[axis] = (0, pad)
    return jnp.pad(a, widths)


def _tpu_vmem_capacity() -> int:
    try:
        cap = getattr(pltpu.get_tpu_info(), "vmem_capacity_bytes", None)
        if cap:
            return int(cap)
    except Exception:
        pass
    return 64 * 2**20  # conservative default (v7x-class, per-TC)


# --------------------------------------------------------------------------- #
# Parameter preparation (run ONCE at load time, not per forward call).
# --------------------------------------------------------------------------- #
def prepare_params(params, *, compute_dtype=None, f_align=256):
    """Stack/pad SwiGLU weights once.

    Returns dict with:
      wf: (3, d_model, f_pad) stacked [w1, w2, w3] (optionally cast to bf16)
      bf: (3, 1, f_pad) stacked gate biases (f32)
      wo: (f_pad, d_model) output projection (optionally cast to bf16)
      bo: (1, d_model) output bias (f32)
    """
    w1, b1, w2, b2, w3, b3, wo, bo = params
    d_model, d_ff = w1.shape
    f_pad = _round_up(d_ff, f_align)
    w_dtype = compute_dtype if compute_dtype is not None else w1.dtype
    wf = jnp.stack([_pad_to(w, 1, f_pad) for w in (w1, w2, w3)]).astype(w_dtype)
    bf = jnp.stack([_pad_to(jnp.reshape(b, (1, -1)), 1, f_pad)
                    for b in (b1, b2, b3)]).astype(jnp.float32)
    wop = _pad_to(wo, 0, f_pad).astype(w_dtype)
    bop = jnp.reshape(bo, (1, -1)).astype(jnp.float32)
    return dict(wf=wf, bf=bf, wo=wop, bo=bop)


# --------------------------------------------------------------------------- #
# Kernel
# --------------------------------------------------------------------------- #
def swiglu_kernel(x_ref, wf_ref, bf_ref, wo_ref, bo_ref, o_ref, acc_ref,
                  *, tf, gate_chunk):
    j = pl.program_id(1)

    @pl.when(j == 0)
    def _init():
        acc_ref[...] = jnp.zeros_like(acc_ref)

    # Cast activations to the weight dtype so the MXU runs its native (bf16)
    # path when a bf16 fast path was requested; accumulation stays f32.
    x = x_ref[...].astype(wf_ref.dtype)

    n_chunks = tf // gate_chunk
    acc_part = None
    for c in range(n_chunks):
        if n_chunks == 1:
            w1t, w2t, w3t = wf_ref[0], wf_ref[1], wf_ref[2]
            b1t, b2t, b3t = bf_ref[0], bf_ref[1], bf_ref[2]
            wot = wo_ref[...]
        else:
            sl = pl.ds(c * gate_chunk, gate_chunk)
            w1t, w2t, w3t = wf_ref[0, :, sl], wf_ref[1, :, sl], wf_ref[2, :, sl]
            b1t, b2t, b3t = bf_ref[0, :, sl], bf_ref[1, :, sl], bf_ref[2, :, sl]
            wot = wo_ref[sl, :]

        x1 = jnp.dot(x, w1t, preferred_element_type=jnp.float32) + b1t
        x2 = jax.nn.sigmoid(jnp.dot(x, w2t, preferred_element_type=jnp.float32) + b2t)
        x3 = jnp.dot(x, w3t, preferred_element_type=jnp.float32) + b3t
        # TODO(synk): dropout omitted (inference/eval semantics -> identity).
        h = (x1 * x2 * x3).astype(wo_ref.dtype)  # downcast before 2nd matmul
        contrib = jnp.dot(h, wot, preferred_element_type=jnp.float32)
        acc_part = contrib if acc_part is None else acc_part + contrib

    acc_ref[...] += acc_part

    @pl.when(j == pl.num_programs(1) - 1)
    def _finalize():
        o_ref[...] = (acc_ref[...] + bo_ref[...]).astype(o_ref.dtype)


# --------------------------------------------------------------------------- #
# Wrapper
# --------------------------------------------------------------------------- #
def swiglu_pallas(x2d, wf, bf, wo, bo, *, tm=None, tf=None):
    M, d_model = x2d.shape
    f_pad = wf.shape[2]
    assert wf.shape == (3, d_model, f_pad)
    assert wo.shape == (f_pad, d_model)

    vmem_cap = _tpu_vmem_capacity()
    small_vmem = vmem_cap <= 96 * 2**20     # v7x-class (64 MiB/TC, 2 TCs/chip)
    budget = int(0.72 * vmem_cap)           # ~46 MiB on v7x, ~92 MiB on v5e/v6e

    # ---- d_ff tile: multiple of 256 lanes (MXU is 2x256 on v6e/v7x) that
    #      divides the padded d_ff, so no per-call re-padding is needed.
    tf_target = tf if tf is not None else (1024 if (not small_vmem and f_pad >= 1024) else 512)
    tf_target = max(256, min(int(tf_target), f_pad))
    tf_sel = 256
    for cand in range(tf_target - tf_target % 256, 255, -256):
        if f_pad % cand == 0:
            tf_sel = cand
            break
    tf = tf_sel

    # ---- row tile
    m_pad8 = _round_up(max(M, 8), 8)
    tm_target = tm if tm is not None else (256 if small_vmem else 512)
    tm_target = _round_up(max(int(tm_target), 8), 8)
    if small_vmem and m_pad8 >= 16:
        # v7x: keep grid[0] >= 2 so the "parallel" row axis can be sharded
        # across both TensorCores even for small M.
        tm = min(tm_target, _round_up(pl.cdiv(m_pad8, 2), 8))
    else:
        # Single-TC chips (v5e/v6e): when all rows fit in one tile, use a single
        # row tile so the weight slabs are streamed from HBM exactly once.
        tm = min(tm_target, m_pad8)

    # Gate chunking bounds the live (tm, tf) f32 intermediates to <=512 lanes.
    gate_chunk = tf
    for cand in (512, 256):
        if tf > cand and tf % cand == 0:
            gate_chunk = cand
            break

    w_item = jnp.dtype(wf.dtype).itemsize
    x_item = jnp.dtype(x2d.dtype).itemsize

    def footprint(tm_, tf_):
        return (2 * tm_ * d_model * x_item            # x tiles (double-buffered)
                + 2 * 3 * d_model * tf_ * w_item      # stacked gate weight tiles
                + 2 * 3 * tf_ * 4                     # gate bias tiles
                + 2 * tf_ * d_model * w_item          # wo tiles
                + 2 * d_model * 4                     # bo
                + 2 * tm_ * d_model * x_item          # output tiles
                + tm_ * d_model * 4                   # f32 accumulator scratch
                + 4 * tm_ * min(tf_, gate_chunk) * 4)  # live gate intermediates

    margin = 4 * 2**20
    while (footprint(tm, tf) + margin > budget and tf > 256
           and f_pad % (tf // 2) == 0 and (tf // 2) % 128 == 0):
        tf //= 2
        gate_chunk = min(gate_chunk, tf)
    while footprint(tm, tf) + margin > budget and tm > 8:
        tm = max(8, _round_up(tm // 2, 8))

    m_pad = _round_up(M, tm)
    x_p = _pad_to(x2d, 0, m_pad)
    grid = (m_pad // tm, f_pad // tf)

    wbytes = wf.nbytes + bf.nbytes + wo.nbytes + bo.nbytes
    cost = pl.CostEstimate(
        flops=8 * m_pad * d_model * f_pad,
        transcendentals=m_pad * f_pad,
        bytes_accessed=x_p.nbytes + grid[0] * wbytes + m_pad * d_model * x_item,
    )

    est = footprint(tm, tf)
    vmem_limit = int(max(32 * 2**20, min(budget, est + 8 * 2**20)))

    out = pl.pallas_call(
        functools.partial(swiglu_kernel, tf=tf, gate_chunk=gate_chunk),
        out_shape=jax.ShapeDtypeStruct((m_pad, d_model), x2d.dtype),
        grid_spec=pltpu.PrefetchScalarGridSpec(
            num_scalar_prefetch=0,
            grid=grid,
            in_specs=[
                pl.BlockSpec((tm, d_model), lambda i, j: (i, 0)),       # x rows
                pl.BlockSpec((3, d_model, tf), lambda i, j: (0, 0, j)),  # gate W
                pl.BlockSpec((3, 1, tf), lambda i, j: (0, 0, j)),        # gate b
                pl.BlockSpec((tf, d_model), lambda i, j: (j, 0)),        # wo tile
                pl.BlockSpec((1, d_model), lambda i, j: (0, 0)),         # bo
            ],
            out_specs=pl.BlockSpec((tm, d_model), lambda i, j: (i, 0)),
            scratch_shapes=[pltpu.VMEM((tm, d_model), jnp.float32)],
        ),
        compiler_params=pltpu.CompilerParams(
            dimension_semantics=("parallel", "arbitrary"),
            vmem_limit_bytes=vmem_limit),
        cost_estimate=cost,
    )(x_p, wf, bf, wo, bo)
    return out[:M]


def swiglu_forward(x, params, *, tm=None, tf=None):
    """x: (batch, seq, d_model) -> (batch, seq, d_model).

    `params` is preferably the dict returned by prepare_params() (fused once at
    load time); a raw 8-tuple is also accepted and fused on the fly.
    """
    if not isinstance(params, dict):
        params = prepare_params(params)
    B, S, d_model = x.shape
    out2d = swiglu_pallas(x.reshape(B * S, d_model), params["wf"], params["bf"],
                          params["wo"], params["bo"], tm=tm, tf=tf)
    return out2d.reshape(B, S, d_model)


# --------------------------------------------------------------------------- #
# Reference + tests
# --------------------------------------------------------------------------- #
def init_params(key, d_model, d_ff, dtype=jnp.float32):
    ks = jax.random.split(key, 8)

    def lin(kw, kb, fan_in, fan_out):
        bound = 1.0 / jnp.sqrt(fan_in)
        w = jax.random.uniform(kw, (fan_in, fan_out), dtype, -bound, bound)
        b = jax.random.uniform(kb, (1, fan_out), dtype, -bound, bound)
        return w, b

    w1, b1 = lin(ks[0], ks[1], d_model, d_ff)
    w2, b2 = lin(ks[2], ks[3], d_model, d_ff)
    w3, b3 = lin(ks[4], ks[5], d_model, d_ff)
    wo, bo = lin(ks[6], ks[7], d_ff, d_model)
    return (w1, b1, w2, b2, w3, b3, wo, bo)


def swiglu_ref(x, params):
    w1, b1, w2, b2, w3, b3, wo, bo = params
    x1 = x @ w1 + b1
    x2 = jax.nn.sigmoid(x @ w2 + b2)
    x3 = x @ w3 + b3
    return (x1 * x2 * x3) @ wo + bo


if __name__ == "__main__":
    # --- Test 1: small f32 problem (weights fused once via prepare_params). ---
    B, S, d_model, d_ff = 2, 8, 32, 64
    key = jax.random.PRNGKey(0)
    kx, kp = jax.random.split(key)
    x = jax.random.normal(kx, (B, S, d_model), jnp.float32)
    params = init_params(kp, d_model, d_ff, jnp.float32)
    prepared = prepare_params(params)

    out = jax.block_until_ready(swiglu_forward(x, prepared))
    ref = swiglu_ref(x, params)
    assert out.shape == (B, S, d_model)
    assert jnp.allclose(out, ref, atol=1e-5, rtol=1e-5)

    # --- Test 2: bf16 weights/acts, exercising row tiling + the d_ff reduction
    #     axis with the f32 VMEM accumulator. ---
    B2, S2, d_model2, d_ff2 = 2, 128, 128, 512
    kx2, kp2 = jax.random.split(jax.random.PRNGKey(1))
    x2 = jax.random.normal(kx2, (B2, S2, d_model2), jnp.float32).astype(jnp.bfloat16)
    params2 = init_params(kp2, d_model2, d_ff2, jnp.bfloat16)
    prepared2 = prepare_params(params2, compute_dtype=jnp.bfloat16)

    out2 = jax.block_until_ready(swiglu_forward(x2, prepared2))
    ref2 = swiglu_ref(x2.astype(jnp.float32),
                      tuple(p.astype(jnp.float32) for p in params2))
    err = float(jnp.max(jnp.abs(out2.astype(jnp.float32) - ref2)))
    scale = float(jnp.max(jnp.abs(ref2))) + 1e-6
    assert out2.shape == (B2, S2, d_model2)
    assert err <= 5e-2 * scale, (err, scale)

    print("KERNEL_OK")
</pallas_src>

<mosaic_0001>
module attributes {stable_mosaic.version = 11 : i64} {
  func.func @swiglu_kernel(%arg0: i32, %arg1: i32, %arg2: memref<8x32xf32, #tpu.memory_space<vmem>>, %arg3: memref<3x32x256xf32, #tpu.memory_space<vmem>>, %arg4: memref<3x1x256xf32, #tpu.memory_space<vmem>>, %arg5: memref<256x32xf32, #tpu.memory_space<vmem>>, %arg6: memref<1x32xf32, #tpu.memory_space<vmem>>, %arg7: memref<8x32xf32, #tpu.memory_space<vmem>>, %arg8: memref<8x32xf32, #tpu.memory_space<vmem>>) attributes {dimension_semantics = [#tpu.dimension_semantics<parallel>, #tpu.dimension_semantics<arbitrary>], iteration_bounds = array<i64: 2, 1>, scalar_prefetch = 0 : i64, scratch_operands = 1 : i64, tpu.core_type = #tpu.core_type<tc>, window_params = [{transform_indices = @transform_0, window_bounds = array<i64: 8, 32>}, {transform_indices = @transform_1, window_bounds = array<i64: 3, 32, 256>}, {transform_indices = @transform_2, window_bounds = array<i64: 3, 1, 256>}, {transform_indices = @transform_3, window_bounds = array<i64: 256, 32>}, {pipeline_mode = #tpu.pipeline_mode<synchronous>, transform_indices = @transform_4, window_bounds = array<i64: 1, 32>}, {transform_indices = @transform_5, window_bounds = array<i64: 8, 32>}]} {
    %c0_i32 = arith.constant 0 : i32
    %0 = arith.cmpi eq, %arg1, %c0_i32 : i32
    %1 = arith.extui %0 : i1 to i32
    %c0_i32_0 = arith.constant 0 : i32
    %2 = arith.cmpi ne, %1, %c0_i32_0 : i32
    scf.if %2 {
      %cst_30 = arith.constant 0.000000e+00 : f32
      %40 = vector.broadcast %cst_30 : f32 to vector<8x32xf32>
      %c0_31 = arith.constant 0 : index
      %c0_32 = arith.constant 0 : index
      %41 = vector.load %arg8[%c0_31, %c0_32] : memref<8x32xf32, #tpu.memory_space<vmem>>, vector<8x32xf32>
      tpu.vector_store %arg8[%c0_31, %c0_32], %40 {strides = array<i32>} : memref<8x32xf32, #tpu.memory_space<vmem>>, vector<8x32xf32>,
    } else {
    }
    %c0 = arith.constant 0 : index
    %c0_1 = arith.constant 0 : index
    %3 = vector.load %arg2[%c0, %c0_1] : memref<8x32xf32, #tpu.memory_space<vmem>>, vector<8x32xf32>
    %c0_2 = arith.constant 0 : index
    %c0_3 = arith.constant 0 : index
    %c0_4 = arith.constant 0 : index
    %4 = vector.load %arg3[%c0_2, %c0_3, %c0_4] : memref<3x32x256xf32, #tpu.memory_space<vmem>>, vector<1x32x256xf32>
    %5 = vector.shape_cast %4 : vector<1x32x256xf32> to vector<32x256xf32>
    %c1 = arith.constant 1 : index
    %c0_5 = arith.constant 0 : index
    %c0_6 = arith.constant 0 : index
    %6 = vector.load %arg3[%c1, %c0_5, %c0_6] : memref<3x32x256xf32, #tpu.memory_space<vmem>>, vector<1x32x256xf32>
    %7 = vector.shape_cast %6 : vector<1x32x256xf32> to vector<32x256xf32>
    %c2 = arith.constant 2 : index
    %c0_7 = arith.constant 0 : index
    %c0_8 = arith.constant 0 : index
    %8 = vector.load %arg3[%c2, %c0_7, %c0_8] : memref<3x32x256xf32, #tpu.memory_space<vmem>>, vector<1x32x256xf32>
    %9 = vector.shape_cast %8 : vector<1x32x256xf32> to vector<32x256xf32>
    %c0_9 = arith.constant 0 : index
    %c0_10 = arith.constant 0 : index
    %c0_11 = arith.constant 0 : index
    %10 = vector.load %arg4[%c0_9, %c0_10, %c0_11] : memref<3x1x256xf32, #tpu.memory_space<vmem>>, vector<1x1x256xf32>
    %11 = vector.shape_cast %10 : vector<1x1x256xf32> to vector<1x256xf32>
    %c1_12 = arith.constant 1 : index
    %c0_13 = arith.constant 0 : index
    %c0_14 = arith.constant 0 : index
    %12 = vector.load %arg4[%c1_12, %c0_13, %c0_14] : memref<3x1x256xf32, #tpu.memory_space<vmem>>, vector<1x1x256xf32>
    %13 = vector.shape_cast %12 : vector<1x1x256xf32> to vector<1x256xf32>
    %c2_15 = arith.constant 2 : index
    %c0_16 = arith.constant 0 : index
    %c0_17 = arith.constant 0 : index
    %14 = vector.load %arg4[%c2_15, %c0_16, %c0_17] : memref<3x1x256xf32, #tpu.memory_space<vmem>>, vector<1x1x256xf32>
    %15 = vector.shape_cast %14 : vector<1x1x256xf32> to vector<1x256xf32>
    %c0_18 = arith.constant 0 : index
    %c0_19 = arith.constant 0 : index
    %16 = vector.load %arg5[%c0_18, %c0_19] : memref<256x32xf32, #tpu.memory_space<vmem>>, vector<256x32xf32>
    %cst = arith.constant dense<0.000000e+00> : vector<8x256xf32>
    %17 = tpu.matmul %3, %5, %cst {dimension_numbers = #tpu.dot_dimension_numbers<[1], [0], [0], [1], [0, 0, 1, 1], [], []>} : vector<8x32xf32>, vector<32x256xf32>, vector<8x256xf32> -> vector<8x256xf32>
    %18 = vector.broadcast %11 : vector<1x256xf32> to vector<8x256xf32>
    %19 = arith.addf %17, %18 : vector<8x256xf32>
    %cst_20 = arith.constant dense<0.000000e+00> : vector<8x256xf32>
    %20 = tpu.matmul %3, %7, %cst_20 {dimension_numbers = #tpu.dot_dimension_numbers<[1], [0], [0], [1], [0, 0, 1, 1], [], []>} : vector<8x32xf32>, vector<32x256xf32>, vector<8x256xf32> -> vector<8x256xf32>
    %21 = vector.broadcast %13 : vector<1x256xf32> to vector<8x256xf32>
    %22 = arith.addf %20, %21 : vector<8x256xf32>
    %23 = arith.negf %22 : vector<8x256xf32>
    %24 = math.exp %23 : vector<8x256xf32>
    %cst_21 = arith.constant 1.000000e+00 : f32
    %25 = vector.broadcast %cst_21 : f32 to vector<8x256xf32>
    %26 = arith.addf %25, %24 : vector<8x256xf32>
    %27 = arith.divf %25, %26 : vector<8x256xf32>
    %cst_22 = arith.constant dense<0.000000e+00> : vector<8x256xf32>
    %28 = tpu.matmul %3, %9, %cst_22 {dimension_numbers = #tpu.dot_dimension_numbers<[1], [0], [0], [1], [0, 0, 1, 1], [], []>} : vector<8x32xf32>, vector<32x256xf32>, vector<8x256xf32> -> vector<8x256xf32>
    %29 = vector.broadcast %15 : vector<1x256xf32> to vector<8x256xf32>
    %30 = arith.addf %28, %29 : vector<8x256xf32>
    %31 = arith.mulf %19, %27 : vector<8x256xf32>
    %32 = arith.mulf %31, %30 : vector<8x256xf32>
    %cst_23 = arith.constant dense<0.000000e+00> : vector<8x32xf32>
    %33 = tpu.matmul %32, %16, %cst_23 {dimension_numbers = #tpu.dot_dimension_numbers<[1], [0], [0], [1], [0, 0, 1, 1], [], []>} : vector<8x256xf32>, vector<256x32xf32>, vector<8x32xf32> -> vector<8x32xf32>
    %c0_24 = arith.constant 0 : index
    %c0_25 = arith.constant 0 : index
    %34 = vector.load %arg8[%c0_24, %c0_25] : memref<8x32xf32, #tpu.memory_space<vmem>>, vector<8x32xf32>
    %35 = arith.addf %34, %33 : vector<8x32xf32>
    %c0_26 = arith.constant 0 : index
    %c0_27 = arith.constant 0 : index
    %36 = vector.load %arg8[%c0_26, %c0_27] : memref<8x32xf32, #tpu.memory_space<vmem>>, vector<8x32xf32>
    tpu.vector_store %arg8[%c0_26, %c0_27], %35 {strides = array<i32>} : memref<8x32xf32, #tpu.memory_space<vmem>>, vector<8x32xf32>,
    %c0_i32_28 = arith.constant 0 : i32
    %37 = arith.cmpi eq, %arg1, %c0_i32_28 : i32
    %38 = arith.extui %37 : i1 to i32
    %c0_i32_29 = arith.constant 0 : i32
    %39 = arith.cmpi ne, %38, %c0_i32_29 : i32
    scf.if %39 {
      %c0_30 = arith.constant 0 : index
      %c0_31 = arith.constant 0 : index
      %40 = vector.load %arg8[%c0_30, %c0_31] : memref<8x32xf32, #tpu.memory_space<vmem>>, vector<8x32xf32>
      %c0_32 = arith.constant 0 : index
      %c0_33 = arith.constant 0 : index
      %41 = vector.load %arg6[%c0_32, %c0_33] : memref<1x32xf32, #tpu.memory_space<vmem>>, vector<1x32xf32>
      %42 = vector.broadcast %41 : vector<1x32xf32> to vector<8x32xf32>
      %43 = arith.addf %40, %42 : vector<8x32xf32>
      %c0_34 = arith.constant 0 : index
      %c0_35 = arith.constant 0 : index
      %44 = vector.load %arg7[%c0_34, %c0_35] : memref<8x32xf32, #tpu.memory_space<vmem>>, vector<8x32xf32>
      tpu.vector_store %arg7[%c0_34, %c0_35], %43 {strides = array<i32>} : memref<8x32xf32, #tpu.memory_space<vmem>>, vector<8x32xf32>,
    } else {
    }
    return
  }
  func.func @transform_0(%arg0: i32, %arg1: i32) -> (i32, i32) {
    %c0_i32 = arith.constant 0 : i32
    %c0_i32_0 = arith.constant 0 : i32
    return %arg0, %c0_i32 : i32, i32
  }
  func.func @transform_1(%arg0: i32, %arg1: i32) -> (i32, i32, i32) {
    %c0_i32 = arith.constant 0 : i32
    %c0_i32_0 = arith.constant 0 : i32
    %c0_i32_1 = arith.constant 0 : i32
    return %c0_i32, %c0_i32_0, %arg1 : i32, i32, i32
  }
  func.func @transform_2(%arg0: i32, %arg1: i32) -> (i32, i32, i32) {
    %c0_i32 = arith.constant 0 : i32
    %c0_i32_0 = arith.constant 0 : i32
    %c0_i32_1 = arith.constant 0 : i32
    return %c0_i32, %c0_i32_0, %arg1 : i32, i32, i32
  }
  func.func @transform_3(%arg0: i32, %arg1: i32) -> (i32, i32) {
    %c0_i32 = arith.constant 0 : i32
    %c0_i32_0 = arith.constant 0 : i32
    return %arg1, %c0_i32 : i32, i32
  }
  func.func @transform_4(%arg0: i32, %arg1: i32) -> (i32, i32) {
    %c0_i32 = arith.constant 0 : i32
    %c0_i32_0 = arith.constant 0 : i32
    %c0_i32_1 = arith.constant 0 : i32
    return %c0_i32, %c0_i32_0 : i32, i32
  }
  func.func @transform_5(%arg0: i32, %arg1: i32) -> (i32, i32) {
    %c0_i32 = arith.constant 0 : i32
    %c0_i32_0 = arith.constant 0 : i32
    return %arg0, %c0_i32 : i32, i32
  }
}

</mosaic_0001>

<llo_original>
// kernel: tpu_custom_call.1
$region0: #{tpu_custom_call.1}
  #allocation0 [shape = 'u32[]', space=smem, size = 0x4, offset = 0x4, fixed_abs, tag = 'smem constant byte address 0x4 - core index']
  #allocation1 [shape = 'u32[144,128]{1,0:T(1,128)}', space=vmem, size = 0x12000, scoped, tag = 'internal scratch']
  #allocation2 [shape = 'f32[8,32]{1,0:T(8,128)}', space=vmem, size = 0x1000, scoped, tag = 'scratch operand']
  %s0 = inlined_call_operand.vmem [shape: f32[16,32], index: 0, kind: input, shape index: {}]
  %s1 = inlined_call_operand.vmem [shape: f32[3,32,256], index: 1, kind: input, shape index: {}]
  %s2 = inlined_call_operand.vmem [shape: f32[3,1,256], index: 2, kind: input, shape index: {}]
  %s3 = inlined_call_operand.vmem [shape: f32[256,32], index: 3, kind: input, shape index: {}]
  %s4 = inlined_call_operand.vmem [shape: f32[1,32], index: 4, kind: input, shape index: {}]
  %s5 = inlined_call_operand.hbm [shape: f32[16,32], index: 5, kind: output, shape index: {}]
  %s6 = sld [smem:[#allocation0]]
  $region61: #{tpu_custom_call.1} parent=0
    _
  %s8 = ssub.s32 1, %s6
  %s9 = scalar_select 0, %s8, %s6
  $region1: #{tpu_custom_call.1} parent=0
    #allocation3 [shape = 'u8[8192]{0}', space=vmem, size = 0x2000, scoped, tag = 'output window, operand 0']
    #allocation4 [shape = 's32[2]{0}', space=sflag, size = 0x8, scoped, tag = 'scoped memory for tpu_custom_call.1']
    %10 = vsyncpa [#allocation4], 0
    %s11 = scalar_lea.sflag [#allocation4], 1
    %12 = vsyncpa %s11, 0
    loop: start=0, step=1, limit=4
    $region2: #{tpu_custom_call.1} parent=1 // loop_pre_header
      _
    $region3: #{tpu_custom_call.1} parent=1 // loop_header
      %s14 = sphi 0, %s18
      %p15 = scmp.ge.s32.totalorder %s14, 4
      %s21 = sphi 0, %s33
      %s22 = sphi 0, %s29
      %s23 = sphi 0, %s21
      %s24 = sphi 0, %s22
      %s25 = sphi 0, %s23
      %s26 = sphi 0, %s24
      %s36 = sphi 0, %s38
      %s39 = sphi 0, %s36
      %s40 = sphi 0, %s39
      %s56 = sphi 0, %s40
      %s62 = sphi 0, %s64
      %s65 = sphi 0, %s62
      %s66 = sphi 0, %s65
      %s82 = sphi 0, %s66
      %s88 = sphi 0, %s90
      %s91 = sphi 0, %s88
      %s92 = sphi 0, %s91
      %s108 = sphi 0, %s92
      %s114 = sphi 0, %s116
      %s117 = sphi 0, %s114
      %s118 = sphi 0, %s117
      %s134 = sphi 0, %s118
      %s138 = sphi 0, %s138
      %s140 = sphi 0, %s138
      %s141 = sphi 0, %s140
      %s155 = sphi 0, %s141
      %s161 = sphi 0, %s163
      %s164 = sphi 0, %s161
      %s165 = sphi 0, %s164
      %s181 = sphi 0, %s165
    $region4: #{tpu_custom_call.1} parent=1 // loop_header_branch
      %17 = sbr.rel (%p15) target = $region8
    $region5: #{tpu_custom_call.1} parent=1 // loop_body
      %s19 = ssub.s32 %s14, 1
      %s20 = ssub.s32 %s14, 2
      %s27 = sadd.s32 1, %s22
      %p28 = scmp.ge.s32.totalorder %s27, 1
      %s29 = scalar_select %p28, 0, %s27
      %s30 = sadd.s32 1, %s21
      %s31 = scalar_select %p28, %s30, %s21
      %p32 = scmp.ge.s32.totalorder %s31, 2
      %s33 = scalar_select %p32, 0, %s31
      %s34 = ssub.s32 %s21, %s33
      %p35 = scmp.eq.s32.totalorder %s34, 0
      %s37 = sadd.s32 %s36, 1
      %s38 = scalar_select %p35, %s36, %s37
      %p41 = pneg %p35
      %p42 = scmp.eq.s32.totalorder %s14, 1
      %p43 = por %p41, %p42
      %p44 = scmp.ne.s32.totalorder %s36, %s39
      %p45 = scmp.eq.s32.totalorder %s14, 0
      %p46 = por %p44, %p45
      %p47 = scmp.ne.s32.totalorder %s36, %s39
      %p48 = scmp.eq.s32.totalorder %s19, 1
      %p49 = por %p47, %p48
      %p50 = scmp.ne.s32.totalorder %s39, %s40
      %p51 = scmp.eq.s32.totalorder %s19, 0
      %p52 = por %p50, %p51
      %p53 = scmp.ne.s32.totalorder %s39, %s40
      %p54 = scmp.eq.s32.totalorder %s20, 1
      %p55 = por %p53, %p54
      %p57 = scmp.ne.s32.totalorder %s40, %s56
      %p58 = scmp.eq.s32.totalorder %s20, 0
      %p59 = por %p57, %p58
      %s60 = ssub.s32 %s22, %s29
      %p61 = scmp.eq.s32.totalorder %s60, 0
      %s63 = sadd.s32 %s62, 1
      %s64 = scalar_select %p61, %s62, %s63
      %p67 = pneg %p61
      %p68 = scmp.eq.s32.totalorder %s14, 1
      %p69 = por %p67, %p68
      %p70 = scmp.ne.s32.totalorder %s62, %s65
      %p71 = scmp.eq.s32.totalorder %s14, 0
      %p72 = por %p70, %p71
      %p73 = scmp.ne.s32.totalorder %s62, %s65
      %p74 = scmp.eq.s32.totalorder %s19, 1
      %p75 = por %p73, %p74
      %p76 = scmp.ne.s32.totalorder %s65, %s66
      %p77 = scmp.eq.s32.totalorder %s19, 0
      %p78 = por %p76, %p77
      %p79 = scmp.ne.s32.totalorder %s65, %s66
      %p80 = scmp.eq.s32.totalorder %s20, 1
      %p81 = por %p79, %p80
      %p83 = scmp.ne.s32.totalorder %s66, %s82
      %p84 = scmp.eq.s32.totalorder %s20, 0
      %p85 = por %p83, %p84
      %s86 = ssub.s32 %s22, %s29
      %p87 = scmp.eq.s32.totalorder %s86, 0
      %s89 = sadd.s32 %s88, 1
      %s90 = scalar_select %p87, %s88, %s89
      %p93 = pneg %p87
      %p94 = scmp.eq.s32.totalorder %s14, 1
      %p95 = por %p93, %p94
      %p96 = scmp.ne.s32.totalorder %s88, %s91
      %p97 = scmp.eq.s32.totalorder %s14, 0
      %p98 = por %p96, %p97
      %p99 = scmp.ne.s32.totalorder %s88, %s91
      %p100 = scmp.eq.s32.totalorder %s19, 1
      %p101 = por %p99, %p100
      %p102 = scmp.ne.s32.totalorder %s91, %s92
      %p103 = scmp.eq.s32.totalorder %s19, 0
      %p104 = por %p102, %p103
      %p105 = scmp.ne.s32.totalorder %s91, %s92
      %p106 = scmp.eq.s32.totalorder %s20, 1
      %p107 = por %p105, %p106
      %p109 = scmp.ne.s32.totalorder %s92, %s108
      %p110 = scmp.eq.s32.totalorder %s20, 0
      %p111 = por %p109, %p110
      %s112 = ssub.s32 %s22, %s29
      %p113 = scmp.eq.s32.totalorder %s112, 0
      %s115 = sadd.s32 %s114, 1
      %s116 = scalar_select %p113, %s114, %s115
      %p119 = pneg %p113
      %p120 = scmp.eq.s32.totalorder %s14, 1
      %p121 = por %p119, %p120
      %p122 = scmp.ne.s32.totalorder %s114, %s117
      %p123 = scmp.eq.s32.totalorder %s14, 0
      %p124 = por %p122, %p123
      %p125 = scmp.ne.s32.totalorder %s114, %s117
      %p126 = scmp.eq.s32.totalorder %s19, 1
      %p127 = por %p125, %p126
      %p128 = scmp.ne.s32.totalorder %s117, %s118
      %p129 = scmp.eq.s32.totalorder %s19, 0
      %p130 = por %p128, %p129
      %p131 = scmp.ne.s32.totalorder %s117, %s118
      %p132 = scmp.eq.s32.totalorder %s20, 1
      %p133 = por %p131, %p132
      %p135 = scmp.ne.s32.totalorder %s118, %s134
      %p136 = scmp.eq.s32.totalorder %s20, 0
      %p137 = por %p135, %p136
      %s139 = sadd.s32 %s138, 1
      %p142 = scmp.eq.s32.totalorder %s14, 1
      %p143 = scmp.ne.s32.totalorder %s138, %s140
      %p144 = scmp.eq.s32.totalorder %s14, 0
      %p145 = por %p143, %p144
      %p146 = scmp.ne.s32.totalorder %s138, %s140
      %p147 = scmp.eq.s32.totalorder %s19, 1
      %p148 = por %p146, %p147
      %p149 = scmp.ne.s32.totalorder %s140, %s141
      %p150 = scmp.eq.s32.totalorder %s19, 0
      %p151 = por %p149, %p150
      %p152 = scmp.ne.s32.totalorder %s140, %s141
      %p153 = scmp.eq.s32.totalorder %s20, 1
      %p154 = por %p152, %p153
      %p156 = scmp.ne.s32.totalorder %s141, %s155
      %p157 = scmp.eq.s32.totalorder %s20, 0
      %p158 = por %p156, %p157
      %s159 = ssub.s32 %s21, %s33
      %p160 = scmp.eq.s32.totalorder %s159, 0
      %s162 = sadd.s32 %s161, 1
      %s163 = scalar_select %p160, %s161, %s162
      %p166 = pneg %p160
      %p167 = scmp.eq.s32.totalorder %s14, 1
      %p168 = por %p166, %p167
      %p169 = scmp.ne.s32.totalorder %s161, %s164
      %p170 = scmp.eq.s32.totalorder %s14, 0
      %p171 = por %p169, %p170
      %p172 = scmp.ne.s32.totalorder %s161, %s164
      %p173 = scmp.eq.s32.totalorder %s19, 1
      %p174 = por %p172, %p173
      %p175 = scmp.ne.s32.totalorder %s164, %s165
      %p176 = scmp.eq.s32.totalorder %s19, 0
      %p177 = por %p175, %p176
      %p178 = scmp.ne.s32.totalorder %s164, %s165
      %p179 = scmp.eq.s32.totalorder %s20, 1
      %p180 = por %p178, %p179
      %p182 = scmp.ne.s32.totalorder %s165, %s181
      %p183 = scmp.eq.s32.totalorder %s20, 0
      %p184 = por %p182, %p183
      %p185 = scmp.le.s32.totalorder 1, %s14
      %p186 = scmp.lt.s32.totalorder %s14, 3
      %p187 = pnand %p185, %p186
      %p188 = pneg %p187
      // Predicated region
      $region9: #{tpu_custom_call.1} parent=5 // pred_check
        _
      $region10: #{tpu_custom_call.1} parent=5 // pred_check_branch
        %190 = sbr.rel (%p187) target = $region12
      $region11: #{tpu_custom_call.1} parent=5 // pred_region
        %s191 = ssub.s32 %s14, 1
        // Predicated region
        $region13: #{tpu_custom_call.1} parent=11 // pred_check
          %p192 = pneg %p78
        $region14: #{tpu_custom_call.1} parent=11 // pred_check_branch
          %194 = sbr.rel (%p192) target = $region16
        $region15: #{tpu_custom_call.1} parent=11 // pred_region
          %s195 = smul.u32 2, %s24
          %p196 = scmp.lt.s32.totalorder %s195, 1
          %s197 = scalar_select %p196, %s195, 1
          %s198 = smul.addr %s197, 8
          %s199 = scalar_lea.vmem %s1, %s198
          %s200 = smul.u32 2, %s24
        $region16: #{tpu_custom_call.1} parent=11 // pred_fallthru
          _
        // Predicated region
        $region17: #{tpu_custom_call.1} parent=11 // pred_check
          %p201 = pneg %p104
        $region18: #{tpu_custom_call.1} parent=11 // pred_check_branch
          %203 = sbr.rel (%p201) target = $region20
        $region19: #{tpu_custom_call.1} parent=11 // pred_region
          %s204 = smul.u32 2, %s24
          %p205 = scmp.lt.s32.totalorder %s204, 1
          %s206 = scalar_select %p205, %s204, 1
          %s207 = scalar_lea.vmem %s2, %s206
          %s208 = smul.u32 2, %s24
        $region20: #{tpu_custom_call.1} parent=11 // pred_fallthru
          _
        // Predicated region
        $region21: #{tpu_custom_call.1} parent=11 // pred_check
          %p209 = pneg %p130
        $region22: #{tpu_custom_call.1} parent=11 // pred_check_branch
          %211 = sbr.rel (%p209) target = $region24
        $region23: #{tpu_custom_call.1} parent=11 // pred_region
          %s212 = smul.u32 32, %s24
          %p213 = scmp.lt.s32.totalorder %s212, 31
          %s214 = scalar_select %p213, %s212, 31
          %s215 = smul.addr %s214, 8
          %s216 = scalar_lea.vmem %s3, %s215
          %s217 = smul.u32 32, %s24
        $region24: #{tpu_custom_call.1} parent=11 // pred_fallthru
          _
        // Predicated region
        $region25: #{tpu_custom_call.1} parent=11 // pred_check
          %p218 = pneg %p151
        $region26: #{tpu_custom_call.1} parent=11 // pred_check_branch
          %220 = sbr.rel (%p218) target = $region28
        $region27: #{tpu_custom_call.1} parent=11 // pred_region
          _
        $region28: #{tpu_custom_call.1} parent=11 // pred_fallthru
          _
      $region12: #{tpu_custom_call.1} parent=5 // pred_fallthru
        _
      %p221 = scmp.lt.s32.totalorder %s14, 2
      // Predicated region
      $region29: #{tpu_custom_call.1} parent=5 // pred_check
        %p222 = pneg %p221
      $region30: #{tpu_custom_call.1} parent=5 // pred_check_branch
        %224 = sbr.rel (%p222) target = $region32
      $region31: #{tpu_custom_call.1} parent=5 // pred_region
        // Predicated region
        $region33: #{tpu_custom_call.1} parent=31 // pred_check
          %p225 = pneg %p46
        $region34: #{tpu_custom_call.1} parent=31 // pred_check_branch
          %227 = sbr.rel (%p225) target = $region36
        $region35: #{tpu_custom_call.1} parent=31 // pred_region
          %p228 = scmp.lt.s32.totalorder %s21, 1
          %s229 = scalar_select %p228, %s21, 1
          %s230 = smul.addr %s229, 8
          %s231 = scalar_lea.vmem %s0, %s230
        $region36: #{tpu_custom_call.1} parent=31 // pred_fallthru
          _
      $region32: #{tpu_custom_call.1} parent=5 // pred_fallthru
        _
      %p232 = scmp.le.s32.totalorder 1, %s14
      %p233 = scmp.lt.s32.totalorder %s14, 3
      %p234 = pnand %p232, %p233
      %p235 = pneg %p234
      // Predicated region
      $region37: #{tpu_custom_call.1} parent=5 // pred_check
        _
      $region38: #{tpu_custom_call.1} parent=5 // pred_check_branch
        %237 = sbr.rel (%p234) target = $region40
      $region39: #{tpu_custom_call.1} parent=5 // pred_region
        %s238 = ssub.s32 %s14, 1
        %p239 = scmp.lt.s32.totalorder %s23, 1
        %s240 = scalar_select %p239, %s23, 1
        %s241 = smul.addr %s240, 8
        %s242 = scalar_lea.vmem %s0, %s241
        %p243 = pneg %p52
        %p244 = pneg %p49
        %s245 = smul.u32 2, %s24
        %p246 = scmp.lt.s32.totalorder %s245, 1
        %s247 = scalar_select %p246, %s245, 1
        %s248 = smul.addr %s247, 8
        %s249 = scalar_lea.vmem %s1, %s248
        %p250 = pneg %p78
        %p251 = pneg %p75
        %s252 = smul.u32 2, %s24
        %p253 = scmp.lt.s32.totalorder %s252, 1
        %s254 = scalar_select %p253, %s252, 1
        %s255 = scalar_lea.vmem %s2, %s254
        %p256 = pneg %p104
        %p257 = pneg %p101
        %s258 = smul.u32 32, %s24
        %p259 = scmp.lt.s32.totalorder %s258, 31
        %s260 = scalar_select %p259, %s258, 31
        %s261 = smul.addr %s260, 8
        %s262 = scalar_lea.vmem %s3, %s261
        %p263 = pneg %p130
        %p264 = pneg %p127
        %p265 = pneg %p151
        %p266 = pneg %p148
        %p267 = pneg %p177
        %p268 = pneg %p174
        %s269 = sand.u32 %s164, 1
        %s270 = scalar_lea.sflag [#allocation4], %s269
        %s271 = sand.u32 %s164, 1
        %s272 = smul.addr %s271, 8
        %s273 = scalar_lea.vmem [#allocation3], %s272
        %p274 = scmp.lt.s32.totalorder %s23, 1
        %s275 = scalar_select %p274, %s23, 1
        %s276 = smul.addr %s275, 8
        %s277 = scalar_lea.vmem %s0, %s276
        %s278 = smul.u32 2, %s24
        %p279 = scmp.lt.s32.totalorder %s278, 1
        %s280 = scalar_select %p279, %s278, 1
        %s281 = smul.addr %s280, 8
        %s282 = scalar_lea.vmem %s1, %s281
        %s283 = smul.u32 2, %s24
        %s284 = smul.u32 2, %s24
        %p285 = scmp.lt.s32.totalorder %s284, 1
        %s286 = scalar_select %p285, %s284, 1
        %s287 = scalar_lea.vmem %s2, %s286
        %s288 = smul.u32 2, %s24
        %s289 = smul.u32 32, %s24
        %p290 = scmp.lt.s32.totalorder %s289, 31
        %s291 = scalar_select %p290, %s289, 31
        %s292 = smul.addr %s291, 8
        %s293 = scalar_lea.vmem %s3, %s292
        %s294 = smul.u32 32, %s24
        %p295 = scmp.eq.s32.totalorder %s24, 0
        // Predicated region
        $region41: #{tpu_custom_call.1} parent=39 // pred_check
          %p296 = pneg %p295
        $region42: #{tpu_custom_call.1} parent=39 // pred_check_branch
          %298 = sbr.rel (%p296) target = $region44
        $region43: #{tpu_custom_call.1} parent=39 // pred_region
          %vm299 = vcmask 261120
          %300 = vst.msk [vmem:[#allocation2] sm:$0xff] %vm299, 0.0
        $region44: #{tpu_custom_call.1} parent=39 // pred_fallthru
          _
        %v301 = vld [vmem:[%s277] sm:$0xff]
        %v302 = vld [vmem:[%s282] sm:$0xff]
        %v303 = vld [vmem:[%s282 + $0x8] sm:$0xff]
        %v304 = vld [vmem:[%s282 + $0x10] sm:$0xff]
        %v305 = vld [vmem:[%s282 + $0x18] sm:$0xff]
        %v306 = vld [vmem:[%s282 + $0x20] sm:$0xff]
        %v307 = vld [vmem:[%s282 + $0x28] sm:$0xff]
        %v308 = vld [vmem:[%s282 + $0x30] sm:$0xff]
        %v309 = vld [vmem:[%s282 + $0x38] sm:$0xff]
        %s310 = scalar_lea.vmem %s282, 64
        %v311 = vld [vmem:[%s310] sm:$0xff]
        %v312 = vld [vmem:[%s310 + $0x8] sm:$0xff]
        %v313 = vld [vmem:[%s310 + $0x10] sm:$0xff]
        %v314 = vld [vmem:[%s310 + $0x18] sm:$0xff]
        %v315 = vld [vmem:[%s310 + $0x20] sm:$0xff]
        %v316 = vld [vmem:[%s310 + $0x28] sm:$0xff]
        %v317 = vld [vmem:[%s310 + $0x30] sm:$0xff]
        %v318 = vld [vmem:[%s310 + $0x38] sm:$0xff]
        %s319 = scalar_lea.vmem %s282, 128
        %v320 = vld [vmem:[%s319] sm:$0xff]
        %v321 = vld [vmem:[%s319 + $0x8] sm:$0xff]
        %v322 = vld [vmem:[%s319 + $0x10] sm:$0xff]
        %v323 = vld [vmem:[%s319 + $0x18] sm:$0xff]
        %v324 = vld [vmem:[%s319 + $0x20] sm:$0xff]
        %v325 = vld [vmem:[%s319 + $0x28] sm:$0xff]
        %v326 = vld [vmem:[%s319 + $0x30] sm:$0xff]
        %v327 = vld [vmem:[%s319 + $0x38] sm:$0xff]
        %v328 = vld [vmem:[%s287] sm:$0x3]
        %s329 = scalar_lea.vmem %s287, 2
        %v330 = vld [vmem:[%s329] sm:$0x3]
        %s331 = scalar_lea.vmem %s287, 4
        %v332 = vld [vmem:[%s331] sm:$0x3]
        %v333 = vld [vmem:[%s293] sm:$0xff]
        %v334 = vld [vmem:[%s293 + $0x8] sm:$0xff]
        %v335 = vld [vmem:[%s293 + $0x10] sm:$0xff]
        %v336 = vld [vmem:[%s293 + $0x18] sm:$0xff]
        %v337 = vld [vmem:[%s293 + $0x20] sm:$0xff]
        %v338 = vld [vmem:[%s293 + $0x28] sm:$0xff]
        %v339 = vld [vmem:[%s293 + $0x30] sm:$0xff]
        %v340 = vld [vmem:[%s293 + $0x38] sm:$0xff]
        %v341 = vld [vmem:[%s293 + $0x40] sm:$0xff]
        %v342 = vld [vmem:[%s293 + $0x48] sm:$0xff]
        %v343 = vld [vmem:[%s293 + $0x50] sm:$0xff]
        %v344 = vld [vmem:[%s293 + $0x58] sm:$0xff]
        %v345 = vld [vmem:[%s293 + $0x60] sm:$0xff]
        %v346 = vld [vmem:[%s293 + $0x68] sm:$0xff]
        %v347 = vld [vmem:[%s293 + $0x70] sm:$0xff]
        %v348 = vld [vmem:[%s293 + $0x78] sm:$0xff]
        %v349 = vld [vmem:[%s293 + $0x80] sm:$0xff]
        %v350 = vld [vmem:[%s293 + $0x88] sm:$0xff]
        %v351 = vld [vmem:[%s293 + $0x90] sm:$0xff]
        %v352 = vld [vmem:[%s293 + $0x98] sm:$0xff]
        %v353 = vld [vmem:[%s293 + $0xa0] sm:$0xff]
        %v354 = vld [vmem:[%s293 + $0xa8] sm:$0xff]
        %v355 = vld [vmem:[%s293 + $0xb0] sm:$0xff]
        %v356 = vld [vmem:[%s293 + $0xb8] sm:$0xff]
        %v357 = vld [vmem:[%s293 + $0xc0] sm:$0xff]
        %v358 = vld [vmem:[%s293 + $0xc8] sm:$0xff]
        %v359 = vld [vmem:[%s293 + $0xd0] sm:$0xff]
        %v360 = vld [vmem:[%s293 + $0xd8] sm:$0xff]
        %v361 = vld [vmem:[%s293 + $0xe0] sm:$0xff]
        %v362 = vld [vmem:[%s293 + $0xe8] sm:$0xff]
        %v363 = vld [vmem:[%s293 + $0xf0] sm:$0xff]
        %v364 = vld [vmem:[%s293 + $0xf8] sm:$0xff]
        %v366 = vlaneseq
        %v367 = vshrl.u32 %v366, 7
        %v368 = vsub.s32 0, %v367
        %v369 = vrot.slane %v328, %v368
        %v370 = vlaneseq
        %v371 = vshrl.u32 %v370, 7
        %v372 = vsub.s32 1, %v371
        %v373 = vrot.slane %v328, %v372
        %vm376 = vcmask 261120
        %v378 = vsel %vm376, %v301, 0
        %380 = vmatprep.subr.mxu0 %v303
        %381 = vmatpush1.msra.mxu0 %v302
        %382 = vmatprep.subr.mxu0 %v305
        %383 = vmatpush1.msra.mxu0 %v304
        %384 = vmatprep.subr.mxu0 %v307
        %385 = vmatpush1.msra.mxu0 %v306
        %386 = vmatprep.subr.mxu0 %v309
        %387 = vmatpush1.msra.mxu0 %v308
        %388 = vmatprep.subr.mxu0 0.0
        %389 = vmatpush1.msra.mxu0 0.0
        %390 = vmatprep.subr.mxu0 0.0
        %391 = vmatpush1.msra.mxu0 0.0
        %392 = vmatprep.subr.mxu0 0.0
        %393 = vmatpush1.msra.mxu0 0.0
        %394 = vmatprep.subr.mxu0 0.0
        %395 = vmatpush1.msra.mxu0 0.0
        %396 = vmatprep.subr.mxu0 0.0
        %397 = vmatpush1.msra.mxu0 0.0
        %398 = vmatprep.subr.mxu0 0.0
        %399 = vmatpush1.msra.mxu0 0.0
        %400 = vmatprep.subr.mxu0 0.0
        %401 = vmatpush1.msra.mxu0 0.0
        %402 = vmatprep.subr.mxu0 0.0
        %403 = vmatpush1.msra.mxu0 0.0
        %404 = vmatprep.subr.mxu0 0.0
        %405 = vmatpush1.msra.mxu0 0.0
        %406 = vmatprep.subr.mxu0 0.0
        %407 = vmatpush1.msra.mxu0 0.0
        %408 = vmatprep.subr.mxu0 0.0
        %409 = vmatpush1.msra.mxu0 0.0
        %410 = vmatprep.subr.mxu0 0.0
        %411 = vmatpush1.msra.mxu0 0.0
        %412 = vmatprep.subr.mxu0 0.0
        %413 = vmatpush1.msra.mxu0 0.0
        %414 = vmatprep.subr.mxu0 0.0
        %415 = vmatpush1.msra.mxu0 0.0
        %416 = vmatprep.subr.mxu0 0.0
        %417 = vmatpush1.msra.mxu0 0.0
        %418 = vmatprep.subr.mxu0 0.0
        %419 = vmatpush1.msra.mxu0 0.0
        %420 = vmatprep.subr.mxu0 0.0
        %421 = vmatpush1.msra.mxu0 0.0
        %422 = vmatprep.subr.mxu0 0.0
        %423 = vmatpush1.msra.mxu0 0.0
        %424 = vmatprep.subr.mxu0 0.0
        %425 = vmatpush1.msra.mxu0 0.0
        %426 = vmatprep.subr.mxu0 0.0
        %427 = vmatpush1.msra.mxu0 0.0
        %428 = vmatprep.subr.mxu0 0.0
        %429 = vmatpush1.msra.mxu0 0.0
        %430 = vmatprep.subr.mxu0 0.0
        %431 = vmatpush1.msra.mxu0 0.0
        %432 = vmatprep.subr.mxu0 0.0
        %433 = vmatpush1.msra.mxu0 0.0
        %434 = vmatprep.subr.mxu0 0.0
        %435 = vmatpush1.msra.mxu0 0.0
        %436 = vmatprep.subr.mxu0 0.0
        %437 = vmatpush1.msra.mxu0 0.0
        %438 = vmatprep.subr.mxu0 0.0
        %439 = vmatpush1.msra.mxu0 0.0
        %440 = vmatprep.subr.mxu0 0.0
        %441 = vmatpush1.msra.mxu0 0.0
        %442 = vmatprep.subr.mxu0 0.0
        %443 = vmatpush1.msra.mxu0 0.0
        %444 = vmatprep.mubr.f32.mxu0 0.0
        %445 = vmatmul.mubr.f32.gmra.mrb[0].mxu0 %v378
        %v446 = vpop.f32.mrb[0].mxu0
        %v447 = vadd.f32 %v369, %v446
        %v448 = vpop.f32.mrb[0].mxu0
        %v449 = vadd.f32 %v373, %v448
        %450 = vdwg.mxu0
        %v452 = vlaneseq
        %v453 = vshrl.u32 %v452, 7
        %v454 = vsub.s32 0, %v453
        %v455 = vrot.slane %v330, %v454
        %v456 = vlaneseq
        %v457 = vshrl.u32 %v456, 7
        %v458 = vsub.s32 1, %v457
        %v459 = vrot.slane %v330, %v458
        %462 = vmatprep.subr.mxu0 %v312
        %463 = vmatpush1.msra.mxu0 %v311
        %464 = vmatprep.subr.mxu0 %v314
        %465 = vmatpush1.msra.mxu0 %v313
        %466 = vmatprep.subr.mxu0 %v316
        %467 = vmatpush1.msra.mxu0 %v315
        %468 = vmatprep.subr.mxu0 %v318
        %469 = vmatpush1.msra.mxu0 %v317
        %470 = vmatprep.subr.mxu0 0.0
        %471 = vmatpush1.msra.mxu0 0.0
        %472 = vmatprep.subr.mxu0 0.0
        %473 = vmatpush1.msra.mxu0 0.0
        %474 = vmatprep.subr.mxu0 0.0
        %475 = vmatpush1.msra.mxu0 0.0
        %476 = vmatprep.subr.mxu0 0.0
        %477 = vmatpush1.msra.mxu0 0.0
        %478 = vmatprep.subr.mxu0 0.0
        %479 = vmatpush1.msra.mxu0 0.0
        %480 = vmatprep.subr.mxu0 0.0
        %481 = vmatpush1.msra.mxu0 0.0
        %482 = vmatprep.subr.mxu0 0.0
        %483 = vmatpush1.msra.mxu0 0.0
        %484 = vmatprep.subr.mxu0 0.0
        %485 = vmatpush1.msra.mxu0 0.0
        %486 = vmatprep.subr.mxu0 0.0
        %487 = vmatpush1.msra.mxu0 0.0
        %488 = vmatprep.subr.mxu0 0.0
        %489 = vmatpush1.msra.mxu0 0.0
        %490 = vmatprep.subr.mxu0 0.0
        %491 = vmatpush1.msra.mxu0 0.0
        %492 = vmatprep.subr.mxu0 0.0
        %493 = vmatpush1.msra.mxu0 0.0
        %494 = vmatprep.subr.mxu0 0.0
        %495 = vmatpush1.msra.mxu0 0.0
        %496 = vmatprep.subr.mxu0 0.0
        %497 = vmatpush1.msra.mxu0 0.0
        %498 = vmatprep.subr.mxu0 0.0
        %499 = vmatpush1.msra.mxu0 0.0
        %500 = vmatprep.subr.mxu0 0.0
        %501 = vmatpush1.msra.mxu0 0.0
        %502 = vmatprep.subr.mxu0 0.0
        %503 = vmatpush1.msra.mxu0 0.0
        %504 = vmatprep.subr.mxu0 0.0
        %505 = vmatpush1.msra.mxu0 0.0
        %506 = vmatprep.subr.mxu0 0.0
        %507 = vmatpush1.msra.mxu0 0.0
        %508 = vmatprep.subr.mxu0 0.0
        %509 = vmatpush1.msra.mxu0 0.0
        %510 = vmatprep.subr.mxu0 0.0
        %511 = vmatpush1.msra.mxu0 0.0
        %512 = vmatprep.subr.mxu0 0.0
        %513 = vmatpush1.msra.mxu0 0.0
        %514 = vmatprep.subr.mxu0 0.0
        %515 = vmatpush1.msra.mxu0 0.0
        %516 = vmatprep.subr.mxu0 0.0
        %517 = vmatpush1.msra.mxu0 0.0
        %518 = vmatprep.subr.mxu0 0.0
        %519 = vmatpush1.msra.mxu0 0.0
        %520 = vmatprep.subr.mxu0 0.0
        %521 = vmatpush1.msra.mxu0 0.0
        %522 = vmatprep.subr.mxu0 0.0
        %523 = vmatpush1.msra.mxu0 0.0
        %524 = vmatprep.subr.mxu0 0.0
        %525 = vmatpush1.msra.mxu0 0.0
        %526 = vmatprep.mubr.f32.mxu0 0.0
        %527 = vmatmul.mubr.f32.gmra.mrb[0].mxu0 %v378
        %v528 = vpop.f32.mrb[0].mxu0
        %v529 = vadd.f32 %v455, %v528
        %v530 = vpop.f32.mrb[0].mxu0
        %v531 = vadd.f32 %v459, %v530
        %532 = vdwg.mxu0
        %v533 = vxor.u32 %v529, 2147483648
        %v534 = vxor.u32 %v531, 2147483648
        %v535 = vmul.f32 %v533, 1.442695
        %v536 = vpow.pop %v535
        %v537 = vmul.f32 %v534, 1.442695
        %v538 = vpow.pop %v537
        %v539 = vadd.f32 %v536, 1.0
        %v540 = vadd.f32 %v538, 1.0
        %v541 = vrcp.pop %v539
        %v542 = vmul.f32 1.0, %v541
        %v543 = vrcp.pop %v540
        %v544 = vmul.f32 1.0, %v543
        %v546 = vlaneseq
        %v547 = vshrl.u32 %v546, 7
        %v548 = vsub.s32 0, %v547
        %v549 = vrot.slane %v332, %v548
        %v550 = vlaneseq
        %v551 = vshrl.u32 %v550, 7
        %v552 = vsub.s32 1, %v551
        %v553 = vrot.slane %v332, %v552
        %556 = vmatprep.subr.mxu0 %v321
        %557 = vmatpush1.msra.mxu0 %v320
        %558 = vmatprep.subr.mxu0 %v323
        %559 = vmatpush1.msra.mxu0 %v322
        %560 = vmatprep.subr.mxu0 %v325
        %561 = vmatpush1.msra.mxu0 %v324
        %562 = vmatprep.subr.mxu0 %v327
        %563 = vmatpush1.msra.mxu0 %v326
        %564 = vmatprep.subr.mxu0 0.0
        %565 = vmatpush1.msra.mxu0 0.0
        %566 = vmatprep.subr.mxu0 0.0
        %567 = vmatpush1.msra.mxu0 0.0
        %568 = vmatprep.subr.mxu0 0.0
        %569 = vmatpush1.msra.mxu0 0.0
        %570 = vmatprep.subr.mxu0 0.0
        %571 = vmatpush1.msra.mxu0 0.0
        %572 = vmatprep.subr.mxu0 0.0
        %573 = vmatpush1.msra.mxu0 0.0
        %574 = vmatprep.subr.mxu0 0.0
        %575 = vmatpush1.msra.mxu0 0.0
        %576 = vmatprep.subr.mxu0 0.0
        %577 = vmatpush1.msra.mxu0 0.0
        %578 = vmatprep.subr.mxu0 0.0
        %579 = vmatpush1.msra.mxu0 0.0
        %580 = vmatprep.subr.mxu0 0.0
        %581 = vmatpush1.msra.mxu0 0.0
        %582 = vmatprep.subr.mxu0 0.0
        %583 = vmatpush1.msra.mxu0 0.0
        %584 = vmatprep.subr.mxu0 0.0
        %585 = vmatpush1.msra.mxu0 0.0
        %586 = vmatprep.subr.mxu0 0.0
        %587 = vmatpush1.msra.mxu0 0.0
        %588 = vmatprep.subr.mxu0 0.0
        %589 = vmatpush1.msra.mxu0 0.0
        %590 = vmatprep.subr.mxu0 0.0
        %591 = vmatpush1.msra.mxu0 0.0
        %592 = vmatprep.subr.mxu0 0.0
        %593 = vmatpush1.msra.mxu0 0.0
        %594 = vmatprep.subr.mxu0 0.0
        %595 = vmatpush1.msra.mxu0 0.0
        %596 = vmatprep.subr.mxu0 0.0
        %597 = vmatpush1.msra.mxu0 0.0
        %598 = vmatprep.subr.mxu0 0.0
        %599 = vmatpush1.msra.mxu0 0.0
        %600 = vmatprep.subr.mxu0 0.0
        %601 = vmatpush1.msra.mxu0 0.0
        %602 = vmatprep.subr.mxu0 0.0
        %603 = vmatpush1.msra.mxu0 0.0
        %604 = vmatprep.subr.mxu0 0.0
        %605 = vmatpush1.msra.mxu0 0.0
        %606 = vmatprep.subr.mxu0 0.0
        %607 = vmatpush1.msra.mxu0 0.0
        %608 = vmatprep.subr.mxu0 0.0
        %609 = vmatpush1.msra.mxu0 0.0
        %610 = vmatprep.subr.mxu0 0.0
        %611 = vmatpush1.msra.mxu0 0.0
        %612 = vmatprep.subr.mxu0 0.0
        %613 = vmatpush1.msra.mxu0 0.0
        %614 = vmatprep.subr.mxu0 0.0
        %615 = vmatpush1.msra.mxu0 0.0
        %616 = vmatprep.subr.mxu0 0.0
        %617 = vmatpush1.msra.mxu0 0.0
        %618 = vmatprep.subr.mxu0 0.0
        %619 = vmatpush1.msra.mxu0 0.0
        %620 = vmatprep.mubr.f32.mxu0 0.0
        %621 = vmatmul.mubr.f32.gmra.mrb[0].mxu0 %v378
        %v622 = vpop.f32.mrb[0].mxu0
        %v623 = vadd.f32 %v549, %v622
        %v624 = vpop.f32.mrb[0].mxu0
        %v625 = vadd.f32 %v553, %v624
        %626 = vdwg.mxu0
        %v627 = vmul.f32 %v447, %v542
        %v628 = vmul.f32 %v449, %v544
        %v629 = vmul.f32 %v627, %v623
        %v630 = vmul.f32 %v628, %v625
        %631 = vmatprep.subr.mxu0 0.0
        %632 = vmatpush1.msra.mxu0 %v333
        %633 = vmatprep.subr.mxu0 0.0
        %634 = vmatpush1.msra.mxu0 %v334
        %635 = vmatprep.subr.mxu0 0.0
        %636 = vmatpush1.msra.mxu0 %v335
        %637 = vmatprep.subr.mxu0 0.0
        %638 = vmatpush1.msra.mxu0 %v336
        %639 = vmatprep.subr.mxu0 0.0
        %640 = vmatpush1.msra.mxu0 %v337
        %641 = vmatprep.subr.mxu0 0.0
        %642 = vmatpush1.msra.mxu0 %v338
        %643 = vmatprep.subr.mxu0 0.0
        %644 = vmatpush1.msra.mxu0 %v339
        %645 = vmatprep.subr.mxu0 0.0
        %646 = vmatpush1.msra.mxu0 %v340
        %647 = vmatprep.subr.mxu0 0.0
        %648 = vmatpush1.msra.mxu0 %v341
        %649 = vmatprep.subr.mxu0 0.0
        %650 = vmatpush1.msra.mxu0 %v342
        %651 = vmatprep.subr.mxu0 0.0
        %652 = vmatpush1.msra.mxu0 %v343
        %653 = vmatprep.subr.mxu0 0.0
        %654 = vmatpush1.msra.mxu0 %v344
        %655 = vmatprep.subr.mxu0 0.0
        %656 = vmatpush1.msra.mxu0 %v345
        %657 = vmatprep.subr.mxu0 0.0
        %658 = vmatpush1.msra.mxu0 %v346
        %659 = vmatprep.subr.mxu0 0.0
        %660 = vmatpush1.msra.mxu0 %v347
        %661 = vmatprep.subr.mxu0 0.0
        %662 = vmatpush1.msra.mxu0 %v348
        %663 = vmatprep.subr.mxu0 0.0
        %664 = vmatpush1.msra.mxu0 %v349
        %665 = vmatprep.subr.mxu0 0.0
        %666 = vmatpush1.msra.mxu0 %v350
        %667 = vmatprep.subr.mxu0 0.0
        %668 = vmatpush1.msra.mxu0 %v351
        %669 = vmatprep.subr.mxu0 0.0
        %670 = vmatpush1.msra.mxu0 %v352
        %671 = vmatprep.subr.mxu0 0.0
        %672 = vmatpush1.msra.mxu0 %v353
        %673 = vmatprep.subr.mxu0 0.0
        %674 = vmatpush1.msra.mxu0 %v354
        %675 = vmatprep.subr.mxu0 0.0
        %676 = vmatpush1.msra.mxu0 %v355
        %677 = vmatprep.subr.mxu0 0.0
        %678 = vmatpush1.msra.mxu0 %v356
        %679 = vmatprep.subr.mxu0 0.0
        %680 = vmatpush1.msra.mxu0 %v357
        %681 = vmatprep.subr.mxu0 0.0
        %682 = vmatpush1.msra.mxu0 %v358
        %683 = vmatprep.subr.mxu0 0.0
        %684 = vmatpush1.msra.mxu0 %v359
        %685 = vmatprep.subr.mxu0 0.0
        %686 = vmatpush1.msra.mxu0 %v360
        %687 = vmatprep.subr.mxu0 0.0
        %688 = vmatpush1.msra.mxu0 %v361
        %689 = vmatprep.subr.mxu0 0.0
        %690 = vmatpush1.msra.mxu0 %v362
        %691 = vmatprep.subr.mxu0 0.0
        %692 = vmatpush1.msra.mxu0 %v363
        %693 = vmatprep.subr.mxu0 0.0
        %694 = vmatpush1.msra.mxu0 %v364
        %695 = vmatprep.mubr.f32.mxu0 %v630
        %696 = vmatmul.mubr.f32.gmra.mrb[0].mxu0 %v629
        %v697 = vpop.f32.mrb[0].mxu0
        %v698 = vadd.f32 0.0, %v697
        %v699 = vpop.f32.mrb[0].mxu0
        %700 = vdwg.mxu0
        %v701 = vld [vmem:[#allocation2] sm:$0xff]
        %v702 = vadd.f32 %v701, %v698
        %703 = vst.msk [vmem:[#allocation2] sm:$0xff] %vm376, %v702
        // Predicated region
        $region45: #{tpu_custom_call.1} parent=39 // pred_check
          %p704 = pneg %p295
        $region46: #{tpu_custom_call.1} parent=39 // pred_check_branch
          %706 = sbr.rel (%p704) target = $region48
        $region47: #{tpu_custom_call.1} parent=39 // pred_region
          %v707 = vld [vmem:[#allocation2] sm:$0xff]
          %v708 = vld [vmem:[%s4] sm:$0x1]
          %v710 = vlaneseq
          %v711 = vshrl.u32 %v710, 7
          %v712 = vsub.s32 0, %v711
          %v713 = vrot.slane %v708, %v712
          %v715 = vadd.f32 %v707, %v713
          %716 = vst.msk [vmem:[%s273] sm:$0xff] %vm376, %v715
        $region48: #{tpu_custom_call.1} parent=39 // pred_fallthru
          _
        %s717 = sand.u32 %s164, 1
        %s718 = scalar_lea.sflag [#allocation4], %s717
        %s719 = sand.u32 %s164, 1
        %s720 = smul.addr %s719, 8
        %s721 = scalar_lea.vmem [#allocation3], %s720
        // Predicated region
        $region49: #{tpu_custom_call.1} parent=39 // pred_check
          %p722 = pneg %p174
        $region50: #{tpu_custom_call.1} parent=39 // pred_check_branch
          %724 = sbr.rel (%p722) target = $region52
        $region51: #{tpu_custom_call.1} parent=39 // pred_region
          %s726 = ssub.s32 128, 128
          %727 = vsyncadd %s718, %s726
          %s728 = smul.addr %s23, 128
          %s729 = scalar_lea.hbm %s5, %s728
          %s731 = sshll.u32 %s721, 4
          %s732 = int_to_ptr.vmem [resolvable:$true] %s731
          %734 = dma.vmem_to_hbm [thread:$0]  %s732, 128, %s729, %s718
        $region52: #{tpu_custom_call.1} parent=39 // pred_fallthru
          _
      $region40: #{tpu_custom_call.1} parent=5 // pred_fallthru
        _
      %p735 = scmp.le.s32.totalorder 2, %s14
      // Predicated region
      $region53: #{tpu_custom_call.1} parent=5 // pred_check
        %p736 = pneg %p735
      $region54: #{tpu_custom_call.1} parent=5 // pred_check_branch
        %738 = sbr.rel (%p736) target = $region56
      $region55: #{tpu_custom_call.1} parent=5 // pred_region
        %s739 = ssub.s32 %s14, 2
        // Predicated region
        $region57: #{tpu_custom_call.1} parent=55 // pred_check
          %p740 = pneg %p180
        $region58: #{tpu_custom_call.1} parent=55 // pred_check_branch
          %742 = sbr.rel (%p740) target = $region60
        $region59: #{tpu_custom_call.1} parent=55 // pred_region
          %s743 = sand.u32 %s165, 1
          %s744 = scalar_lea.sflag [#allocation4], %s743
          %s745 = sand.u32 %s165, 1
          %s746 = smul.addr %s745, 8
          %s747 = scalar_lea.vmem [#allocation3], %s746
          %748 = dma.done %s744, 128
        $region60: #{tpu_custom_call.1} parent=55 // pred_fallthru
          _
      $region56: #{tpu_custom_call.1} parent=5 // pred_fallthru
        _
    $region6: #{tpu_custom_call.1} parent=1 // loop_footer
      %s18 = sadd.s32 1, %s14
    $region7: #{tpu_custom_call.1} parent=1 // loop_footer_branch
      %13 = sbr.rel target = $region3
    $region8: #{tpu_custom_call.1} parent=1 // loop_exit
      _
    %749 = vsyncpa [#allocation4], 1
    %s750 = scalar_lea.sflag [#allocation4], 1
    %751 = vsyncpa %s750, 1

</llo_original>
